<compile_context>
chip_gen: v6e
topology: v6e:2x2x1
jax: 0.10.0
libtpu: 0.0.40
codegen_flags: <defaults>
</compile_context>

<pallas_src>
import functools
import math

import jax
import jax.numpy as jnp
from jax.experimental import pallas as pl
from jax.experimental.pallas import tpu as pltpu


# ------------------------------ fused kernel --------------------------------


def _fused_spatio_conv_kernel(a_ref, x_ref, w_ref, b_ref, o_ref, *,
                              num_heads, n_nodes):
    """One grid step == one batch element (all heads handled inside).

    a_ref : (H*n, n)             stacked per-head tree matrices [A_0; A_1; ...]
    x_ref : (n, t*c_in)          this batch's features, node rows, (t, c_in) in lanes
    w_ref : (H, t*c_in, t*c_out) I_t (x) ((W_h @ W_fc^T) / H), block-diagonal over t
    b_ref : (1, t*c_out)         conv bias tiled across the t time steps
    o_ref : (n, t*c_out)         relu(conv(mean_h(tree_agg_h @ W_h))) for this batch
    """
    # Spatial (tree) aggregation for ALL heads in one MXU matmul:
    #   g[h*n + i, ti*c_in + k] = sum_m A_h[i, m] * x[m, ti, k]
    g = jnp.dot(a_ref[...], x_ref[...], preferred_element_type=jnp.float32)

    # Head projection + head mean + 1x1 conv (already folded into w_ref), plus bias.
    # Start from the broadcast bias and accumulate each head's contribution.
    acc = jnp.broadcast_to(b_ref[...], o_ref.shape).astype(jnp.float32)
    for h in range(num_heads):                    # static, short unrolled loop
        g_h = g[h * n_nodes:(h + 1) * n_nodes, :]  # static sublane slice
        acc = acc + jnp.dot(g_h, w_ref[h], preferred_element_type=jnp.float32)

    o_ref[...] = jnp.maximum(acc, 0.0).astype(o_ref.dtype)   # relu


# --------------------------------- wrapper ----------------------------------


def spatio_conv_layer(x, natree, w_tree, w_fc, b_fc):
    """Pallas implementation of SpatioConvLayer.forward.

    x      : (b, n, t, c_in)  float32
    natree : (H, n, n)        per-head spatial tree matrix
    w_tree : (H, c_in, c_out) per-head TreeAt projection weights
    w_fc   : (c_out, c_out)   FullyConvLayer (1x1 conv) weight
    b_fc   : (c_out,)         FullyConvLayer bias
    returns: (b, n, t, c_out)
    """
    b, n, t, c_in = x.shape
    H = natree.shape[0]
    c_out = w_tree.shape[-1]
    tci = t * c_in
    tco = t * c_out

    # ---- tiny weight folding in plain JAX (exact, linear rewrites) ----
    hp = jax.lax.Precision.HIGHEST
    # (W_h @ W_fc^T) / H  -> (H, c_in, c_out)
    w_comb = jnp.einsum('hko,po->hkp', w_tree, w_fc, precision=hp) / H
    # Block-diagonal expansion over the t time steps: I_t (x) W_comb_h, so the channel
    # projection applies directly to the lane-flattened (n, t*c_in) aggregate.
    w_blk = jnp.einsum('ij,hkp->hikjp', jnp.eye(t, dtype=w_comb.dtype), w_comb)
    w_blk = w_blk.reshape(H, tci, tco)
    bias = jnp.tile(b_fc, (t,)).reshape(1, tco)       # bias[ti*c_out + c] = b_fc[c]
    a_stack = natree.reshape(H * n, n)                # stacked tree matrices

    # Free, relayout-free reshapes (no transposes).
    x2 = x.reshape(b, n, tci)

    # Explicit VMEM budget: all resident blocks, x2/output double-buffered, + slack.
    block_bytes = 4 * (H * n * n + H * tci * tco + tco + 2 * n * tci + 2 * n * tco)
    vmem_limit = int(min(max(2 * block_bytes + (1 << 20), 4 << 20), 32 << 20))

    kernel = functools.partial(_fused_spatio_conv_kernel,
                               num_heads=H, n_nodes=n)

    y = pl.pallas_call(
        kernel,
        out_shape=jax.ShapeDtypeStruct((b, n, tco), jnp.float32),
        grid=(b,),
        in_specs=[
            pl.BlockSpec((H * n, n), lambda i: (0, 0)),        # stacked A (resident)
            pl.BlockSpec((None, n, tci), lambda i: (i, 0, 0)),  # this batch's x
            pl.BlockSpec((H, tci, tco), lambda i: (0, 0, 0)),   # folded weights
            pl.BlockSpec((1, tco), lambda i: (0, 0)),           # tiled bias
        ],
        out_specs=pl.BlockSpec((None, n, tco), lambda i: (i, 0, 0)),
        compiler_params=pltpu.CompilerParams(
            dimension_semantics=("parallel",),
            vmem_limit_bytes=vmem_limit),
    )(a_stack, x2, w_blk, bias)

    # free split of the last dim back to (b, n, t, c_out)
    return y.reshape(b, n, t, c_out)


# ----------------------------------- main ------------------------------------


if __name__ == "__main__":
    # small, deterministic problem
    b, n, t = 2, 16, 8
    c_in, c_out = 4, 8
    num_heads = 4

    key = jax.random.PRNGKey(0)
    kx, ka, kw1, kw2, kb = jax.random.split(key, 5)

    x = jax.random.normal(kx, (b, n, t, c_in), dtype=jnp.float32)

    # deterministic "spatial tree" matrices, row-normalized per head
    natree = jax.random.uniform(ka, (num_heads, n, n), dtype=jnp.float32)
    natree = natree / jnp.sum(natree, axis=-1, keepdims=True)

    # TreeAt per-head projection weights (c_in -> c_out)
    w_tree = jax.random.normal(kw1, (num_heads, c_in, c_out),
                               dtype=jnp.float32) * (1.0 / math.sqrt(c_in))

    # FullyConvLayer: Conv2d(c_out, c_out, (1,1)) -> weight (c_out, c_out), bias (c_out,)
    w_fc = jax.random.normal(kw2, (c_out, c_out),
                             dtype=jnp.float32) * (1.0 / math.sqrt(c_out))
    b_fc = jax.random.normal(kb, (c_out,), dtype=jnp.float32) * 0.1

    out = jax.jit(spatio_conv_layer)(x, natree, w_tree, w_fc, b_fc)
    out = jax.block_until_ready(out)

    # pure-JAX reference of the same forward pass (un-folded order of operations)
    def reference(x, natree, w_tree, w_fc, b_fc):
        hp = jax.lax.Precision.HIGHEST
        agg = jnp.einsum('him,bmtk->bhitk', natree, x, precision=hp)
        proj = jnp.einsum('bhitk,hko->bhito', agg, w_tree, precision=hp)
        avg = jnp.mean(proj, axis=1)                               # head mean
        y = jnp.einsum('bnto,po->bntp', avg, w_fc, precision=hp) + b_fc
        return jnp.maximum(y, 0.0)

    ref = jax.jit(reference)(x, natree, w_tree, w_fc, b_fc)
    ref = jax.block_until_ready(ref)

    assert out.shape == (b, n, t, c_out), out.shape
    assert bool(jnp.all(out >= 0.0))                 # relu output
    max_err = float(jnp.max(jnp.abs(out - ref)))
    assert max_err < 1e-2, f"max abs error vs reference: {max_err}"
    print("KERNEL_OK")
</pallas_src>

<mosaic_0001>
module attributes {stable_mosaic.version = 11 : i64} {
  func.func @_fused_spatio_conv_kernel(%arg0: i32, %arg1: memref<64x16xf32, #tpu.memory_space<vmem>>, %arg2: memref<1x16x32xf32, #tpu.memory_space<vmem>>, %arg3: memref<4x32x64xf32, #tpu.memory_space<vmem>>, %arg4: memref<1x64xf32, #tpu.memory_space<vmem>>, %arg5: memref<1x16x64xf32, #tpu.memory_space<vmem>>) attributes {dimension_semantics = [#tpu.dimension_semantics<parallel>], iteration_bounds = array<i64: 2>, scalar_prefetch = 0 : i64, scratch_operands = 0 : i64, tpu.core_type = #tpu.core_type<tc>, window_params = [{pipeline_mode = #tpu.pipeline_mode<synchronous>, transform_indices = @transform_0, window_bounds = array<i64: 64, 16>}, {transform_indices = @transform_1, window_bounds = array<i64: 1, 16, 32>}, {pipeline_mode = #tpu.pipeline_mode<synchronous>, transform_indices = @transform_2, window_bounds = array<i64: 4, 32, 64>}, {pipeline_mode = #tpu.pipeline_mode<synchronous>, transform_indices = @transform_3, window_bounds = array<i64: 1, 64>}, {transform_indices = @transform_4, window_bounds = array<i64: 1, 16, 64>}]} {
    %c0 = arith.constant 0 : index
    %c0_0 = arith.constant 0 : index
    %0 = vector.load %arg1[%c0, %c0_0] : memref<64x16xf32, #tpu.memory_space<vmem>>, vector<64x16xf32>
    %c0_1 = arith.constant 0 : index
    %c0_2 = arith.constant 0 : index
    %c0_3 = arith.constant 0 : index
    %1 = vector.load %arg2[%c0_1, %c0_2, %c0_3] : memref<1x16x32xf32, #tpu.memory_space<vmem>>, vector<1x16x32xf32>
    %2 = vector.shape_cast %1 : vector<1x16x32xf32> to vector<16x32xf32>
    %cst = arith.constant dense<0.000000e+00> : vector<64x32xf32>
    %3 = tpu.matmul %0, %2, %cst {dimension_numbers = #tpu.dot_dimension_numbers<[1], [0], [0], [1], [0, 0, 1, 1], [], []>} : vector<64x16xf32>, vector<16x32xf32>, vector<64x32xf32> -> vector<64x32xf32>
    %c0_4 = arith.constant 0 : index
    %c0_5 = arith.constant 0 : index
    %4 = vector.load %arg4[%c0_4, %c0_5] : memref<1x64xf32, #tpu.memory_space<vmem>>, vector<1x64xf32>
    %5 = vector.shape_cast %4 : vector<1x64xf32> to vector<1x64xf32>
    %6 = vector.broadcast %5 : vector<1x64xf32> to vector<16x64xf32>
    %7 = vector.extract_strided_slice %3 {offsets = [0, 0], sizes = [16, 32], strides = [1, 1]} : vector<64x32xf32> to vector<16x32xf32>
    %c0_6 = arith.constant 0 : index
    %c0_7 = arith.constant 0 : index
    %c0_8 = arith.constant 0 : index
    %8 = vector.load %arg3[%c0_6, %c0_7, %c0_8] : memref<4x32x64xf32, #tpu.memory_space<vmem>>, vector<1x32x64xf32>
    %9 = vector.shape_cast %8 : vector<1x32x64xf32> to vector<32x64xf32>
    %cst_9 = arith.constant dense<0.000000e+00> : vector<16x64xf32>
    %10 = tpu.matmul %7, %9, %cst_9 {dimension_numbers = #tpu.dot_dimension_numbers<[1], [0], [0], [1], [0, 0, 1, 1], [], []>} : vector<16x32xf32>, vector<32x64xf32>, vector<16x64xf32> -> vector<16x64xf32>
    %11 = arith.addf %6, %10 : vector<16x64xf32>
    %12 = vector.extract_strided_slice %3 {offsets = [16, 0], sizes = [16, 32], strides = [1, 1]} : vector<64x32xf32> to vector<16x32xf32>
    %c1 = arith.constant 1 : index
    %c0_10 = arith.constant 0 : index
    %c0_11 = arith.constant 0 : index
    %13 = vector.load %arg3[%c1, %c0_10, %c0_11] : memref<4x32x64xf32, #tpu.memory_space<vmem>>, vector<1x32x64xf32>
    %14 = vector.shape_cast %13 : vector<1x32x64xf32> to vector<32x64xf32>
    %cst_12 = arith.constant dense<0.000000e+00> : vector<16x64xf32>
    %15 = tpu.matmul %12, %14, %cst_12 {dimension_numbers = #tpu.dot_dimension_numbers<[1], [0], [0], [1], [0, 0, 1, 1], [], []>} : vector<16x32xf32>, vector<32x64xf32>, vector<16x64xf32> -> vector<16x64xf32>
    %16 = arith.addf %11, %15 : vector<16x64xf32>
    %17 = vector.extract_strided_slice %3 {offsets = [32, 0], sizes = [16, 32], strides = [1, 1]} : vector<64x32xf32> to vector<16x32xf32>
    %c2 = arith.constant 2 : index
    %c0_13 = arith.constant 0 : index
    %c0_14 = arith.constant 0 : index
    %18 = vector.load %arg3[%c2, %c0_13, %c0_14] : memref<4x32x64xf32, #tpu.memory_space<vmem>>, vector<1x32x64xf32>
    %19 = vector.shape_cast %18 : vector<1x32x64xf32> to vector<32x64xf32>
    %cst_15 = arith.constant dense<0.000000e+00> : vector<16x64xf32>
    %20 = tpu.matmul %17, %19, %cst_15 {dimension_numbers = #tpu.dot_dimension_numbers<[1], [0], [0], [1], [0, 0, 1, 1], [], []>} : vector<16x32xf32>, vector<32x64xf32>, vector<16x64xf32> -> vector<16x64xf32>
    %21 = arith.addf %16, %20 : vector<16x64xf32>
    %22 = vector.extract_strided_slice %3 {offsets = [48, 0], sizes = [16, 32], strides = [1, 1]} : vector<64x32xf32> to vector<16x32xf32>
    %c3 = arith.constant 3 : index
    %c0_16 = arith.constant 0 : index
    %c0_17 = arith.constant 0 : index
    %23 = vector.load %arg3[%c3, %c0_16, %c0_17] : memref<4x32x64xf32, #tpu.memory_space<vmem>>, vector<1x32x64xf32>
    %24 = vector.shape_cast %23 : vector<1x32x64xf32> to vector<32x64xf32>
    %cst_18 = arith.constant dense<0.000000e+00> : vector<16x64xf32>
    %25 = tpu.matmul %22, %24, %cst_18 {dimension_numbers = #tpu.dot_dimension_numbers<[1], [0], [0], [1], [0, 0, 1, 1], [], []>} : vector<16x32xf32>, vector<32x64xf32>, vector<16x64xf32> -> vector<16x64xf32>
    %26 = arith.addf %21, %25 : vector<16x64xf32>
    %cst_19 = arith.constant 0.000000e+00 : f32
    %27 = vector.broadcast %cst_19 : f32 to vector<16x64xf32>
    %28 = arith.maximumf %26, %27 : vector<16x64xf32>
    %c0_20 = arith.constant 0 : index
    %c0_21 = arith.constant 0 : index
    %c0_22 = arith.constant 0 : index
    %29 = vector.load %arg5[%c0_20, %c0_21, %c0_22] : memref<1x16x64xf32, #tpu.memory_space<vmem>>, vector<1x16x64xf32>
    %30 = vector.shape_cast %29 : vector<1x16x64xf32> to vector<16x64xf32>
    %31 = vector.shape_cast %28 : vector<16x64xf32> to vector<1x16x64xf32>
    tpu.vector_store %arg5[%c0_20, %c0_21, %c0_22], %31 {strides = array<i32>} : memref<1x16x64xf32, #tpu.memory_space<vmem>>, vector<1x16x64xf32>,
    return
  }
  func.func @transform_0(%arg0: i32) -> (i32, i32) {
    %c0_i32 = arith.constant 0 : i32
    %c0_i32_0 = arith.constant 0 : i32
    %c0_i32_1 = arith.constant 0 : i32
    return %c0_i32, %c0_i32_0 : i32, i32
  }
  func.func @transform_1(%arg0: i32) -> (i32, i32, i32) {
    %c0_i32 = arith.constant 0 : i32
    %c0_i32_0 = arith.constant 0 : i32
    %c0_i32_1 = arith.constant 0 : i32
    return %arg0, %c0_i32, %c0_i32_0 : i32, i32, i32
  }
  func.func @transform_2(%arg0: i32) -> (i32, i32, i32) {
    %c0_i32 = arith.constant 0 : i32
    %c0_i32_0 = arith.constant 0 : i32
    %c0_i32_1 = arith.constant 0 : i32
    %c0_i32_2 = arith.constant 0 : i32
    return %c0_i32, %c0_i32_0, %c0_i32_1 : i32, i32, i32
  }
  func.func @transform_3(%arg0: i32) -> (i32, i32) {
    %c0_i32 = arith.constant 0 : i32
    %c0_i32_0 = arith.constant 0 : i32
    %c0_i32_1 = arith.constant 0 : i32
    return %c0_i32, %c0_i32_0 : i32, i32
  }
  func.func @transform_4(%arg0: i32) -> (i32, i32, i32) {
    %c0_i32 = arith.constant 0 : i32
    %c0_i32_0 = arith.constant 0 : i32
    %c0_i32_1 = arith.constant 0 : i32
    return %arg0, %c0_i32, %c0_i32_0 : i32, i32, i32
  }
}

</mosaic_0001>

<llo_original>
// kernel: tile.8
$region0: #{tile.8}
  #allocation0 [shape = 's32[1]{0}', space=sflag, size = 0x4, scoped, tag = 'scoped memory for tile.8']
  %s0 = inlined_call_operand.vmem [shape: f32[8], index: 0, kind: input, shape index: {}]
  %s1 = inlined_call_operand.vmem [shape: f32[8,8], index: 1, kind: output, shape index: {}]
  // Predicated region
  $region2: #{tile.8} parent=0 // pred_check
    _
  $region3: #{tile.8} parent=0 // pred_check_branch
    %3 = sbr.rel (0) target = $region5
  $region4: #{tile.8} parent=0 // pred_region
    _
  $region5: #{tile.8} parent=0 // pred_fallthru
    _
  %v4 = vld [vmem:[%s0] ss:$0 sm:$0xff]
  %5 = vst [vmem:[%s1] sm:$0xff] %v4

// kernel: tile.9
$region0: #{tile.9}
  %s0 = inlined_call_operand.vmem [shape: f32[8,8], index: 0, kind: input, shape index: {}]
  %s1 = inlined_call_operand.vmem [shape: f32[1,64], index: 1, kind: output, shape index: {}]
  $region1: #{tile.9} parent=0
    #allocation0 [shape = 'u8[4096]{0}', space=vmem, size = 0x1000, scoped, tag = 'scoped mem for output reshape']
    %v2 = vld [vmem:[%s0] sm:$0x1]
    %vm3 = vcmask 64512
    %4 = vst.msk [vmem:[#allocation0] sm:$0x1] %vm3, %v2
    %s5 = scalar_lea.vmem %s0, 7
    %v6 = vld [vmem:[%s5] sm:$0x1]
    %7 = vrot.lane.b32.xlu0 %v6, 56
    %v8 = vpop.permute.xlu0 %7
    %vm9 = vcmask 523712
    %10 = vst.msk [vmem:[#allocation0] sm:$0x1] %vm9, %v8
    %s11 = scalar_lea.vmem %s0, 6
    %v12 = vld [vmem:[%s11] sm:$0x1]
    %13 = vrot.lane.b32.xlu0 %v12, 48
    %v14 = vpop.permute.xlu0 %13
    %vm15 = vcmask 458112
    %16 = vst.msk [vmem:[#allocation0] sm:$0x1] %vm15, %v14
    %s17 = scalar_lea.vmem %s0, 5
    %v18 = vld [vmem:[%s17] sm:$0x1]
    %19 = vrot.lane.b32.xlu0 %v18, 40
    %v20 = vpop.permute.xlu0 %19
    %vm21 = vcmask 392512
    %22 = vst.msk [vmem:[#allocation0] sm:$0x1] %vm21, %v20
    %s23 = scalar_lea.vmem %s0, 4
    %v24 = vld [vmem:[%s23] sm:$0x1]
    %25 = vrot.lane.b32.xlu0 %v24, 32
    %v26 = vpop.permute.xlu0 %25
    %vm27 = vcmask 326912
    %28 = vst.msk [vmem:[#allocation0] sm:$0x1] %vm27, %v26
    %s29 = scalar_lea.vmem %s0, 3
    %v30 = vld [vmem:[%s29] sm:$0x1]
    %31 = vrot.lane.b32.xlu0 %v30, 24
    %v32 = vpop.permute.xlu0 %31
    %vm33 = vcmask 261312
    %34 = vst.msk [vmem:[#allocation0] sm:$0x1] %vm33, %v32
    %s35 = scalar_lea.vmem %s0, 2
    %v36 = vld [vmem:[%s35] sm:$0x1]
    %37 = vrot.lane.b32.xlu0 %v36, 16
    %v38 = vpop.permute.xlu0 %37
    %vm39 = vcmask 195712
    %40 = vst.msk [vmem:[#allocation0] sm:$0x1] %vm39, %v38
    %s41 = scalar_lea.vmem %s0, 1
    %v42 = vld [vmem:[%s41] sm:$0x1]
    %43 = vrot.lane.b32.xlu0 %v42, 8
    %v44 = vpop.permute.xlu0 %43
    %vm45 = vcmask 130112
    %46 = vst.msk [vmem:[#allocation0] sm:$0x1] %vm45, %v44
    %s48 = sshll.u32 1, 1
    %s49 = ssub.s32 %s48, 1
    %v51 = vld [vmem:[#allocation0] sm:%s49]
    %s52 = sshll.u32 1, 1
    %s53 = ssub.s32 %s52, 1
    %54 = vst [vmem:[%s1] sm:%s53] %v51

// kernel: spatio_conv_layer.1
$region0: #{spatio_conv_layer.1}
  #allocation0 [shape = 'u32[]', space=smem, size = 0x4, offset = 0x4, fixed_abs, tag = 'smem constant byte address 0x4 - core index']
  #allocation1 [shape = 'u32[144,128]{1,0:T(1,128)}', space=vmem, size = 0x12000, scoped, tag = 'internal scratch']
  %s0 = inlined_call_operand.vmem [shape: f32[64,16], index: 0, kind: input, shape index: {}]
  %s1 = inlined_call_operand.vmem [shape: f32[2,16,32], index: 1, kind: input, shape index: {}]
  %s2 = inlined_call_operand.vmem [shape: f32[4,32,64], index: 2, kind: input, shape index: {}]
  %s3 = inlined_call_operand.vmem [shape: f32[1,64], index: 3, kind: input, shape index: {}]
  %s4 = inlined_call_operand.vmem [shape: f32[2,16,64], index: 4, kind: output, shape index: {}]
  %s5 = sld [smem:[#allocation0]]
  $region49: #{spatio_conv_layer.1} parent=0
    _
  %s7 = ssub.s32 1, %s5
  %s8 = scalar_select 0, %s7, %s5
  loop: start=0, step=1, limit=4
  $region2: #{spatio_conv_layer.1} parent=0 // loop_pre_header
    _
  $region3: #{spatio_conv_layer.1} parent=0 // loop_header
    %s10 = sphi 0, %s14
    %p11 = scmp.ge.s32.totalorder %s10, 4
    %s18 = sphi 0, %s18
    %s20 = sphi 0, %s18
    %s21 = sphi 0, %s20
    %s35 = sphi 0, %s21
    %s41 = sphi 0, %s43
    %s44 = sphi 0, %s41
    %s45 = sphi 0, %s44
    %s61 = sphi 0, %s45
    %s65 = sphi 0, %s65
    %s67 = sphi 0, %s65
    %s68 = sphi 0, %s67
    %s82 = sphi 0, %s68
    %s86 = sphi 0, %s86
    %s88 = sphi 0, %s86
    %s89 = sphi 0, %s88
    %s103 = sphi 0, %s89
    %s109 = sphi 0, %s111
    %s112 = sphi 0, %s109
    %s113 = sphi 0, %s112
    %s129 = sphi 0, %s113
  $region4: #{spatio_conv_layer.1} parent=0 // loop_header_branch
    %13 = sbr.rel (%p11) target = $region8
  $region5: #{spatio_conv_layer.1} parent=0 // loop_body
    %s15 = ssub.s32 %s10, 1
    %s16 = ssub.s32 %s10, 2
    %s17 = sadd.s32 %s10, 1
    %s19 = sadd.s32 %s18, 1
    %p22 = scmp.eq.s32.totalorder %s10, 1
    %p23 = scmp.ne.s32.totalorder %s18, %s20
    %p24 = scmp.eq.s32.totalorder %s10, 0
    %p25 = por %p23, %p24
    %p26 = scmp.ne.s32.totalorder %s18, %s20
    %p27 = scmp.eq.s32.totalorder %s15, 1
    %p28 = por %p26, %p27
    %p29 = scmp.ne.s32.totalorder %s20, %s21
    %p30 = scmp.eq.s32.totalorder %s15, 0
    %p31 = por %p29, %p30
    %p32 = scmp.ne.s32.totalorder %s20, %s21
    %p33 = scmp.eq.s32.totalorder %s16, 1
    %p34 = por %p32, %p33
    %p36 = scmp.ne.s32.totalorder %s21, %s35
    %p37 = scmp.eq.s32.totalorder %s16, 0
    %p38 = por %p36, %p37
    %s39 = ssub.s32 %s10, %s17
    %p40 = scmp.eq.s32.totalorder %s39, 0
    %s42 = sadd.s32 %s41, 1
    %s43 = scalar_select %p40, %s41, %s42
    %p46 = pneg %p40
    %p47 = scmp.eq.s32.totalorder %s10, 1
    %p48 = por %p46, %p47
    %p49 = scmp.ne.s32.totalorder %s41, %s44
    %p50 = scmp.eq.s32.totalorder %s10, 0
    %p51 = por %p49, %p50
    %p52 = scmp.ne.s32.totalorder %s41, %s44
    %p53 = scmp.eq.s32.totalorder %s15, 1
    %p54 = por %p52, %p53
    %p55 = scmp.ne.s32.totalorder %s44, %s45
    %p56 = scmp.eq.s32.totalorder %s15, 0
    %p57 = por %p55, %p56
    %p58 = scmp.ne.s32.totalorder %s44, %s45
    %p59 = scmp.eq.s32.totalorder %s16, 1
    %p60 = por %p58, %p59
    %p62 = scmp.ne.s32.totalorder %s45, %s61
    %p63 = scmp.eq.s32.totalorder %s16, 0
    %p64 = por %p62, %p63
    %s66 = sadd.s32 %s65, 1
    %p69 = scmp.eq.s32.totalorder %s10, 1
    %p70 = scmp.ne.s32.totalorder %s65, %s67
    %p71 = scmp.eq.s32.totalorder %s10, 0
    %p72 = por %p70, %p71
    %p73 = scmp.ne.s32.totalorder %s65, %s67
    %p74 = scmp.eq.s32.totalorder %s15, 1
    %p75 = por %p73, %p74
    %p76 = scmp.ne.s32.totalorder %s67, %s68
    %p77 = scmp.eq.s32.totalorder %s15, 0
    %p78 = por %p76, %p77
    %p79 = scmp.ne.s32.totalorder %s67, %s68
    %p80 = scmp.eq.s32.totalorder %s16, 1
    %p81 = por %p79, %p80
    %p83 = scmp.ne.s32.totalorder %s68, %s82
    %p84 = scmp.eq.s32.totalorder %s16, 0
    %p85 = por %p83, %p84
    %s87 = sadd.s32 %s86, 1
    %p90 = scmp.eq.s32.totalorder %s10, 1
    %p91 = scmp.ne.s32.totalorder %s86, %s88
    %p92 = scmp.eq.s32.totalorder %s10, 0
    %p93 = por %p91, %p92
    %p94 = scmp.ne.s32.totalorder %s86, %s88
    %p95 = scmp.eq.s32.totalorder %s15, 1
    %p96 = por %p94, %p95
    %p97 = scmp.ne.s32.totalorder %s88, %s89
    %p98 = scmp.eq.s32.totalorder %s15, 0
    %p99 = por %p97, %p98
    %p100 = scmp.ne.s32.totalorder %s88, %s89
    %p101 = scmp.eq.s32.totalorder %s16, 1
    %p102 = por %p100, %p101
    %p104 = scmp.ne.s32.totalorder %s89, %s103
    %p105 = scmp.eq.s32.totalorder %s16, 0
    %p106 = por %p104, %p105
    %s107 = ssub.s32 %s10, %s17
    %p108 = scmp.eq.s32.totalorder %s107, 0
    %s110 = sadd.s32 %s109, 1
    %s111 = scalar_select %p108, %s109, %s110
    %p114 = pneg %p108
    %p115 = scmp.eq.s32.totalorder %s10, 1
    %p116 = por %p114, %p115
    %p117 = scmp.ne.s32.totalorder %s109, %s112
    %p118 = scmp.eq.s32.totalorder %s10, 0
    %p119 = por %p117, %p118
    %p120 = scmp.ne.s32.totalorder %s109, %s112
    %p121 = scmp.eq.s32.totalorder %s15, 1
    %p122 = por %p120, %p121
    %p123 = scmp.ne.s32.totalorder %s112, %s113
    %p124 = scmp.eq.s32.totalorder %s15, 0
    %p125 = por %p123, %p124
    %p126 = scmp.ne.s32.totalorder %s112, %s113
    %p127 = scmp.eq.s32.totalorder %s16, 1
    %p128 = por %p126, %p127
    %p130 = scmp.ne.s32.totalorder %s113, %s129
    %p131 = scmp.eq.s32.totalorder %s16, 0
    %p132 = por %p130, %p131
    %p133 = scmp.le.s32.totalorder 1, %s10
    %p134 = scmp.lt.s32.totalorder %s10, 3
    %p135 = pnand %p133, %p134
    %p136 = pneg %p135
    // Predicated region
    $region9: #{spatio_conv_layer.1} parent=5 // pred_check
      _
    $region10: #{spatio_conv_layer.1} parent=5 // pred_check_branch
      %138 = sbr.rel (%p135) target = $region12
    $region11: #{spatio_conv_layer.1} parent=5 // pred_region
      %s139 = ssub.s32 %s10, 1
      // Predicated region
      $region13: #{spatio_conv_layer.1} parent=11 // pred_check
        %p140 = pneg %p31
      $region14: #{spatio_conv_layer.1} parent=11 // pred_check_branch
        %142 = sbr.rel (%p140) target = $region16
      $region15: #{spatio_conv_layer.1} parent=11 // pred_region
        _
      $region16: #{spatio_conv_layer.1} parent=11 // pred_fallthru
        _
      // Predicated region
      $region17: #{spatio_conv_layer.1} parent=11 // pred_check
        %p143 = pneg %p78
      $region18: #{spatio_conv_layer.1} parent=11 // pred_check_branch
        %145 = sbr.rel (%p143) target = $region20
      $region19: #{spatio_conv_layer.1} parent=11 // pred_region
        _
      $region20: #{spatio_conv_layer.1} parent=11 // pred_fallthru
        _
      // Predicated region
      $region21: #{spatio_conv_layer.1} parent=11 // pred_check
        %p146 = pneg %p99
      $region22: #{spatio_conv_layer.1} parent=11 // pred_check_branch
        %148 = sbr.rel (%p146) target = $region24
      $region23: #{spatio_conv_layer.1} parent=11 // pred_region
        _
      $region24: #{spatio_conv_layer.1} parent=11 // pred_fallthru
        _
    $region12: #{spatio_conv_layer.1} parent=5 // pred_fallthru
      _
    %p149 = scmp.lt.s32.totalorder %s10, 2
    // Predicated region
    $region25: #{spatio_conv_layer.1} parent=5 // pred_check
      %p150 = pneg %p149
    $region26: #{spatio_conv_layer.1} parent=5 // pred_check_branch
      %152 = sbr.rel (%p150) target = $region28
    $region27: #{spatio_conv_layer.1} parent=5 // pred_region
      // Predicated region
      $region29: #{spatio_conv_layer.1} parent=27 // pred_check
        %p153 = pneg %p51
      $region30: #{spatio_conv_layer.1} parent=27 // pred_check_branch
        %155 = sbr.rel (%p153) target = $region32
      $region31: #{spatio_conv_layer.1} parent=27 // pred_region
        %p156 = scmp.lt.s32.totalorder %s10, 1
        %s157 = scalar_select %p156, %s10, 1
        %s158 = smul.addr %s157, 2
        %s159 = smul.addr %s158, 8
        %s160 = scalar_lea.vmem %s1, %s159
      $region32: #{spatio_conv_layer.1} parent=27 // pred_fallthru
        _
    $region28: #{spatio_conv_layer.1} parent=5 // pred_fallthru
      _
    %p161 = scmp.le.s32.totalorder 1, %s10
    %p162 = scmp.lt.s32.totalorder %s10, 3
    %p163 = pnand %p161, %p162
    %p164 = pneg %p163
    // Predicated region
    $region33: #{spatio_conv_layer.1} parent=5 // pred_check
      _
    $region34: #{spatio_conv_layer.1} parent=5 // pred_check_branch
      %166 = sbr.rel (%p163) target = $region36
    $region35: #{spatio_conv_layer.1} parent=5 // pred_region
      %s167 = ssub.s32 %s10, 1
      %p168 = pneg %p31
      %p169 = pneg %p28
      %p170 = scmp.lt.s32.totalorder %s15, 1
      %s171 = scalar_select %p170, %s15, 1
      %s172 = smul.addr %s171, 2
      %s173 = smul.addr %s172, 8
      %s174 = scalar_lea.vmem %s1, %s173
      %p175 = pneg %p57
      %p176 = pneg %p54
      %p177 = pneg %p78
      %p178 = pneg %p75
      %p179 = pneg %p99
      %p180 = pneg %p96
      %p181 = pneg %p125
      %p182 = pneg %p122
      %p183 = scmp.lt.s32.totalorder %s15, 1
      %s184 = scalar_select %p183, %s15, 1
      %s185 = smul.addr %s184, 2
      %s186 = smul.addr %s185, 8
      %s187 = scalar_lea.vmem %s4, %s186
      %p188 = scmp.lt.s32.totalorder %s15, 1
      %s189 = scalar_select %p188, %s15, 1
      %s190 = smul.addr %s189, 2
      %s191 = smul.addr %s190, 8
      %s192 = scalar_lea.vmem %s1, %s191
      %p193 = scmp.lt.s32.totalorder %s15, 1
      %s194 = scalar_select %p193, %s15, 1
      %s195 = smul.addr %s194, 2
      %s196 = smul.addr %s195, 8
      %s197 = scalar_lea.vmem %s4, %s196
      %v198 = vld [vmem:[%s0] sm:$0xff]
      %v199 = vld [vmem:[%s0 + $0x8] sm:$0xff]
      %v200 = vld [vmem:[%s0 + $0x10] sm:$0xff]
      %v201 = vld [vmem:[%s0 + $0x18] sm:$0xff]
      %v202 = vld [vmem:[%s0 + $0x20] sm:$0xff]
      %v203 = vld [vmem:[%s0 + $0x28] sm:$0xff]
      %v204 = vld [vmem:[%s0 + $0x30] sm:$0xff]
      %v205 = vld [vmem:[%s0 + $0x38] sm:$0xff]
      %v206 = vld [vmem:[%s192] sm:$0xff]
      %v207 = vld [vmem:[%s192 + $0x8] sm:$0xff]
      %vm208 = vcmask 130048
      %v210 = vsel %vm208, %v198, 0
      %v213 = vsel %vm208, %v199, 0
      %v216 = vsel %vm208, %v200, 0
      %v219 = vsel %vm208, %v201, 0
      %v222 = vsel %vm208, %v202, 0
      %v225 = vsel %vm208, %v203, 0
      %v228 = vsel %vm208, %v204, 0
      %v231 = vsel %vm208, %v205, 0
      %233 = vmatprep.subr.mxu0 0.0
      %234 = vmatpush1.msra.mxu0 0.0
      %235 = vmatprep.subr.mxu0 0.0
      %236 = vmatpush1.msra.mxu0 0.0
      %237 = vmatprep.subr.mxu0 0.0
      %238 = vmatpush1.msra.mxu0 0.0
      %239 = vmatprep.subr.mxu0 0.0
      %240 = vmatpush1.msra.mxu0 0.0
      %241 = vmatprep.subr.mxu0 0.0
      %242 = vmatpush1.msra.mxu0 0.0
      %243 = vmatprep.subr.mxu0 0.0
      %244 = vmatpush1.msra.mxu0 0.0
      %245 = vmatprep.subr.mxu0 0.0
      %246 = vmatpush1.msra.mxu0 0.0
      %247 = vmatprep.subr.mxu0 0.0
      %248 = vmatpush1.msra.mxu0 0.0
      %249 = vmatprep.subr.mxu0 0.0
      %250 = vmatpush1.msra.mxu0 0.0
      %251 = vmatprep.subr.mxu0 0.0
      %252 = vmatpush1.msra.mxu0 0.0
      %253 = vmatprep.subr.mxu0 0.0
      %254 = vmatpush1.msra.mxu0 0.0
      %255 = vmatprep.subr.mxu0 0.0
      %256 = vmatpush1.msra.mxu0 0.0
      %257 = vmatprep.subr.mxu0 0.0
      %258 = vmatpush1.msra.mxu0 0.0
      %259 = vmatprep.subr.mxu0 0.0
      %260 = vmatpush1.msra.mxu0 0.0
      %261 = vmatprep.subr.mxu0 0.0
      %262 = vmatpush1.msra.mxu0 %v207
      %263 = vmatprep.subr.mxu0 0.0
      %264 = vmatpush1.msra.mxu0 %v206
      %265 = vmatprep.subr.mxu0 0.0
      %266 = vmatpush2.msra.mxu0 0.0
      %267 = vmatprep.subr.mxu0 0.0
      %268 = vmatpush2.msra.mxu0 0.0
      %269 = vmatprep.subr.mxu0 0.0
      %270 = vmatpush2.msra.mxu0 0.0
      %271 = vmatprep.subr.mxu0 0.0
      %272 = vmatpush2.msra.mxu0 0.0
      %273 = vmatprep.subr.mxu0 0.0
      %274 = vmatpush2.msra.mxu0 0.0
      %275 = vmatprep.subr.mxu0 0.0
      %276 = vmatpush2.msra.mxu0 0.0
      %277 = vmatprep.subr.mxu0 0.0
      %278 = vmatpush2.msra.mxu0 0.0
      %279 = vmatprep.subr.mxu0 0.0
      %280 = vmatpush2.msra.mxu0 0.0
      %281 = vmatprep.subr.mxu0 0.0
      %282 = vmatpush2.msra.mxu0 0.0
      %283 = vmatprep.subr.mxu0 0.0
      %284 = vmatpush2.msra.mxu0 0.0
      %285 = vmatprep.subr.mxu0 0.0
      %286 = vmatpush2.msra.mxu0 0.0
      %287 = vmatprep.subr.mxu0 0.0
      %288 = vmatpush2.msra.mxu0 0.0
      %289 = vmatprep.subr.mxu0 0.0
      %290 = vmatpush2.msra.mxu0 0.0
      %291 = vmatprep.subr.mxu0 0.0
      %292 = vmatpush2.msra.mxu0 0.0
      %293 = vmatprep.subr.mxu0 0.0
      %294 = vmatpush2.msra.mxu0 0.0
      %295 = vmatprep.subr.mxu0 0.0
      %296 = vmatpush2.msra.mxu0 0.0
      %297 = vmatprep.mubr.f32.mxu0 0.0
      %298 = vmatmul.mubr.f32.gmra.mxu0 %v210
      %v299 = vpop.f32.mrf.mxu0
      %v300 = vadd.f32 0.0, %v299
      %v301 = vpop.f32.mrf.mxu0
      %302 = vmatprep.mubr.f32.mxu0 0.0
      %303 = vmatmul.mubr.f32.gmra.mxu0 %v213
      %v304 = vpop.f32.mrf.mxu0
      %v305 = vadd.f32 0.0, %v304
      %v306 = vpop.f32.mrf.mxu0
      %307 = vmatprep.mubr.f32.mxu0 0.0
      %308 = vmatmul.mubr.f32.gmra.mxu0 %v216
      %v309 = vpop.f32.mrf.mxu0
      %v310 = vadd.f32 0.0, %v309
      %v311 = vpop.f32.mrf.mxu0
      %312 = vmatprep.mubr.f32.mxu0 0.0
      %313 = vmatmul.mubr.f32.gmra.mxu0 %v219
      %v314 = vpop.f32.mrf.mxu0
      %v315 = vadd.f32 0.0, %v314
      %v316 = vpop.f32.mrf.mxu0
      %317 = vmatprep.mubr.f32.mxu0 0.0
      %318 = vmatmul.mubr.f32.gmra.mxu0 %v222
      %v319 = vpop.f32.mrf.mxu0
      %v320 = vadd.f32 0.0, %v319
      %v321 = vpop.f32.mrf.mxu0
      %322 = vmatprep.mubr.f32.mxu0 0.0
      %323 = vmatmul.mubr.f32.gmra.mxu0 %v225
      %v324 = vpop.f32.mrf.mxu0
      %v325 = vadd.f32 0.0, %v324
      %v326 = vpop.f32.mrf.mxu0
      %327 = vmatprep.mubr.f32.mxu0 0.0
      %328 = vmatmul.mubr.f32.gmra.mxu0 %v228
      %v329 = vpop.f32.mrf.mxu0
      %v330 = vadd.f32 0.0, %v329
      %v331 = vpop.f32.mrf.mxu0
      %332 = vmatprep.mubr.f32.mxu0 0.0
      %333 = vmatmul.mubr.f32.gmra.mxu0 %v231
      %v334 = vpop.f32.mrf.mxu0
      %v335 = vadd.f32 0.0, %v334
      %v336 = vpop.f32.mrf.mxu0
      %337 = vdwg.mxu0
      %v338 = vld [vmem:[%s3] sm:$0x1]
      %v340 = vlaneseq
      %v341 = vshrl.u32 %v340, 7
      %v342 = vsub.s32 0, %v341
      %v343 = vrot.slane %v338, %v342
      %v345 = vld [vmem:[%s2] sm:$0xff]
      %v346 = vld [vmem:[%s2 + $0x8] sm:$0xff]
      %v347 = vld [vmem:[%s2 + $0x10] sm:$0xff]
      %v348 = vld [vmem:[%s2 + $0x18] sm:$0xff]
      %vm349 = vcmask 261120
      %v351 = vsel %vm349, %v300, 0
      %v354 = vsel %vm349, %v305, 0
      %356 = vmatprep.subr.mxu0 0.0
      %357 = vmatpush1.msra.mxu0 0.0
      %358 = vmatprep.subr.mxu0 0.0
      %359 = vmatpush1.msra.mxu0 0.0
      %360 = vmatprep.subr.mxu0 0.0
      %361 = vmatpush1.msra.mxu0 0.0
      %362 = vmatprep.subr.mxu0 0.0
      %363 = vmatpush1.msra.mxu0 0.0
      %364 = vmatprep.subr.mxu0 0.0
      %365 = vmatpush1.msra.mxu0 0.0
      %366 = vmatprep.subr.mxu0 0.0
      %367 = vmatpush1.msra.mxu0 0.0
      %368 = vmatprep.subr.mxu0 0.0
      %369 = vmatpush1.msra.mxu0 0.0
      %370 = vmatprep.subr.mxu0 0.0
      %371 = vmatpush1.msra.mxu0 0.0
      %372 = vmatprep.subr.mxu0 0.0
      %373 = vmatpush1.msra.mxu0 0.0
      %374 = vmatprep.subr.mxu0 0.0
      %375 = vmatpush1.msra.mxu0 0.0
      %376 = vmatprep.subr.mxu0 0.0
      %377 = vmatpush1.msra.mxu0 0.0
      %378 = vmatprep.subr.mxu0 0.0
      %379 = vmatpush1.msra.mxu0 0.0
      %380 = vmatprep.subr.mxu0 0.0
      %381 = vmatpush1.msra.mxu0 %v348
      %382 = vmatprep.subr.mxu0 0.0
      %383 = vmatpush1.msra.mxu0 %v347
      %384 = vmatprep.subr.mxu0 0.0
      %385 = vmatpush1.msra.mxu0 %v346
      %386 = vmatprep.subr.mxu0 0.0
      %387 = vmatpush1.msra.mxu0 %v345
      %388 = vmatprep.subr.mxu0 0.0
      %389 = vmatpush2.msra.mxu0 0.0
      %390 = vmatprep.subr.mxu0 0.0
      %391 = vmatpush2.msra.mxu0 0.0
      %392 = vmatprep.subr.mxu0 0.0
      %393 = vmatpush2.msra.mxu0 0.0
      %394 = vmatprep.subr.mxu0 0.0
      %395 = vmatpush2.msra.mxu0 0.0
      %396 = vmatprep.subr.mxu0 0.0
      %397 = vmatpush2.msra.mxu0 0.0
      %398 = vmatprep.subr.mxu0 0.0
      %399 = vmatpush2.msra.mxu0 0.0
      %400 = vmatprep.subr.mxu0 0.0
      %401 = vmatpush2.msra.mxu0 0.0
      %402 = vmatprep.subr.mxu0 0.0
      %403 = vmatpush2.msra.mxu0 0.0
      %404 = vmatprep.subr.mxu0 0.0
      %405 = vmatpush2.msra.mxu0 0.0
      %406 = vmatprep.subr.mxu0 0.0
      %407 = vmatpush2.msra.mxu0 0.0
      %408 = vmatprep.subr.mxu0 0.0
      %409 = vmatpush2.msra.mxu0 0.0
      %410 = vmatprep.subr.mxu0 0.0
      %411 = vmatpush2.msra.mxu0 0.0
      %412 = vmatprep.subr.mxu0 0.0
      %413 = vmatpush2.msra.mxu0 0.0
      %414 = vmatprep.subr.mxu0 0.0
      %415 = vmatpush2.msra.mxu0 0.0
      %416 = vmatprep.subr.mxu0 0.0
      %417 = vmatpush2.msra.mxu0 0.0
      %418 = vmatprep.subr.mxu0 0.0
      %419 = vmatpush2.msra.mxu0 0.0
      %420 = vmatprep.mubr.f32.mxu0 0.0
      %421 = vmatmul.mubr.f32.gmra.mxu0 %v351
      %v422 = vpop.f32.mrf.mxu0
      %v423 = vadd.f32 0.0, %v422
      %v424 = vpop.f32.mrf.mxu0
      %425 = vmatprep.mubr.f32.mxu0 0.0
      %426 = vmatmul.mubr.f32.gmra.mxu0 %v354
      %v427 = vpop.f32.mrf.mxu0
      %v428 = vadd.f32 0.0, %v427
      %v429 = vpop.f32.mrf.mxu0
      %430 = vdwg.mxu0
      %v431 = vadd.f32 %v343, %v423
      %v432 = vadd.f32 %v343, %v428
      %s433 = scalar_lea.vmem %s2, 32
      %v434 = vld [vmem:[%s433] sm:$0xff]
      %v435 = vld [vmem:[%s433 + $0x8] sm:$0xff]
      %v436 = vld [vmem:[%s433 + $0x10] sm:$0xff]
      %v437 = vld [vmem:[%s433 + $0x18] sm:$0xff]
      %v439 = vsel %vm349, %v310, 0
      %v442 = vsel %vm349, %v315, 0
      %444 = vmatprep.subr.mxu0 0.0
      %445 = vmatpush1.msra.mxu0 0.0
      %446 = vmatprep.subr.mxu0 0.0
      %447 = vmatpush1.msra.mxu0 0.0
      %448 = vmatprep.subr.mxu0 0.0
      %449 = vmatpush1.msra.mxu0 0.0
      %450 = vmatprep.subr.mxu0 0.0
      %451 = vmatpush1.msra.mxu0 0.0
      %452 = vmatprep.subr.mxu0 0.0
      %453 = vmatpush1.msra.mxu0 0.0
      %454 = vmatprep.subr.mxu0 0.0
      %455 = vmatpush1.msra.mxu0 0.0
      %456 = vmatprep.subr.mxu0 0.0
      %457 = vmatpush1.msra.mxu0 0.0
      %458 = vmatprep.subr.mxu0 0.0
      %459 = vmatpush1.msra.mxu0 0.0
      %460 = vmatprep.subr.mxu0 0.0
      %461 = vmatpush1.msra.mxu0 0.0
      %462 = vmatprep.subr.mxu0 0.0
      %463 = vmatpush1.msra.mxu0 0.0
      %464 = vmatprep.subr.mxu0 0.0
      %465 = vmatpush1.msra.mxu0 0.0
      %466 = vmatprep.subr.mxu0 0.0
      %467 = vmatpush1.msra.mxu0 0.0
      %468 = vmatprep.subr.mxu0 0.0
      %469 = vmatpush1.msra.mxu0 %v437
      %470 = vmatprep.subr.mxu0 0.0
      %471 = vmatpush1.msra.mxu0 %v436
      %472 = vmatprep.subr.mxu0 0.0
      %473 = vmatpush1.msra.mxu0 %v435
      %474 = vmatprep.subr.mxu0 0.0
      %475 = vmatpush1.msra.mxu0 %v434
      %476 = vmatprep.subr.mxu0 0.0
      %477 = vmatpush2.msra.mxu0 0.0
      %478 = vmatprep.subr.mxu0 0.0
      %479 = vmatpush2.msra.mxu0 0.0
      %480 = vmatprep.subr.mxu0 0.0
      %481 = vmatpush2.msra.mxu0 0.0
      %482 = vmatprep.subr.mxu0 0.0
      %483 = vmatpush2.msra.mxu0 0.0
      %484 = vmatprep.subr.mxu0 0.0
      %485 = vmatpush2.msra.mxu0 0.0
      %486 = vmatprep.subr.mxu0 0.0
      %487 = vmatpush2.msra.mxu0 0.0
      %488 = vmatprep.subr.mxu0 0.0
      %489 = vmatpush2.msra.mxu0 0.0
      %490 = vmatprep.subr.mxu0 0.0
      %491 = vmatpush2.msra.mxu0 0.0
      %492 = vmatprep.subr.mxu0 0.0
      %493 = vmatpush2.msra.mxu0 0.0
      %494 = vmatprep.subr.mxu0 0.0
      %495 = vmatpush2.msra.mxu0 0.0
      %496 = vmatprep.subr.mxu0 0.0
      %497 = vmatpush2.msra.mxu0 0.0
      %498 = vmatprep.subr.mxu0 0.0
      %499 = vmatpush2.msra.mxu0 0.0
      %500 = vmatprep.subr.mxu0 0.0
      %501 = vmatpush2.msra.mxu0 0.0
      %502 = vmatprep.subr.mxu0 0.0
      %503 = vmatpush2.msra.mxu0 0.0
      %504 = vmatprep.subr.mxu0 0.0
      %505 = vmatpush2.msra.mxu0 0.0
      %506 = vmatprep.subr.mxu0 0.0
      %507 = vmatpush2.msra.mxu0 0.0
      %508 = vmatprep.mubr.f32.mxu0 0.0
      %509 = vmatmul.mubr.f32.gmra.mxu0 %v439
      %v510 = vpop.f32.mrf.mxu0
      %v511 = vadd.f32 0.0, %v510
      %v512 = vpop.f32.mrf.mxu0
      %513 = vmatprep.mubr.f32.mxu0 0.0
      %514 = vmatmul.mubr.f32.gmra.mxu0 %v442
      %v515 = vpop.f32.mrf.mxu0
      %v516 = vadd.f32 0.0, %v515
      %v517 = vpop.f32.mrf.mxu0
      %518 = vdwg.mxu0
      %v519 = vadd.f32 %v431, %v511
      %v520 = vadd.f32 %v432, %v516
      %s521 = scalar_lea.vmem %s2, 64
      %v522 = vld [vmem:[%s521] sm:$0xff]
      %v523 = vld [vmem:[%s521 + $0x8] sm:$0xff]
      %v524 = vld [vmem:[%s521 + $0x10] sm:$0xff]
      %v525 = vld [vmem:[%s521 + $0x18] sm:$0xff]
      %v527 = vsel %vm349, %v320, 0
      %v530 = vsel %vm349, %v325, 0
      %532 = vmatprep.subr.mxu0 0.0
      %533 = vmatpush1.msra.mxu0 0.0
      %534 = vmatprep.subr.mxu0 0.0
      %535 = vmatpush1.msra.mxu0 0.0
      %536 = vmatprep.subr.mxu0 0.0
      %537 = vmatpush1.msra.mxu0 0.0
      %538 = vmatprep.subr.mxu0 0.0
      %539 = vmatpush1.msra.mxu0 0.0
      %540 = vmatprep.subr.mxu0 0.0
      %541 = vmatpush1.msra.mxu0 0.0
      %542 = vmatprep.subr.mxu0 0.0
      %543 = vmatpush1.msra.mxu0 0.0
      %544 = vmatprep.subr.mxu0 0.0
      %545 = vmatpush1.msra.mxu0 0.0
      %546 = vmatprep.subr.mxu0 0.0
      %547 = vmatpush1.msra.mxu0 0.0
      %548 = vmatprep.subr.mxu0 0.0
      %549 = vmatpush1.msra.mxu0 0.0
      %550 = vmatprep.subr.mxu0 0.0
      %551 = vmatpush1.msra.mxu0 0.0
      %552 = vmatprep.subr.mxu0 0.0
      %553 = vmatpush1.msra.mxu0 0.0
      %554 = vmatprep.subr.mxu0 0.0
      %555 = vmatpush1.msra.mxu0 0.0
      %556 = vmatprep.subr.mxu0 0.0
      %557 = vmatpush1.msra.mxu0 %v525
      %558 = vmatprep.subr.mxu0 0.0
      %559 = vmatpush1.msra.mxu0 %v524
      %560 = vmatprep.subr.mxu0 0.0
      %561 = vmatpush1.msra.mxu0 %v523
      %562 = vmatprep.subr.mxu0 0.0
      %563 = vmatpush1.msra.mxu0 %v522
      %564 = vmatprep.subr.mxu0 0.0
      %565 = vmatpush2.msra.mxu0 0.0
      %566 = vmatprep.subr.mxu0 0.0
      %567 = vmatpush2.msra.mxu0 0.0
      %568 = vmatprep.subr.mxu0 0.0
      %569 = vmatpush2.msra.mxu0 0.0
      %570 = vmatprep.subr.mxu0 0.0
      %571 = vmatpush2.msra.mxu0 0.0
      %572 = vmatprep.subr.mxu0 0.0
      %573 = vmatpush2.msra.mxu0 0.0
      %574 = vmatprep.subr.mxu0 0.0
      %575 = vmatpush2.msra.mxu0 0.0
      %576 = vmatprep.subr.mxu0 0.0
      %577 = vmatpush2.msra.mxu0 0.0
      %578 = vmatprep.subr.mxu0 0.0
      %579 = vmatpush2.msra.mxu0 0.0
      %580 = vmatprep.subr.mxu0 0.0
      %581 = vmatpush2.msra.mxu0 0.0
      %582 = vmatprep.subr.mxu0 0.0
      %583 = vmatpush2.msra.mxu0 0.0
      %584 = vmatprep.subr.mxu0 0.0
      %585 = vmatpush2.msra.mxu0 0.0
      %586 = vmatprep.subr.mxu0 0.0
      %587 = vmatpush2.msra.mxu0 0.0
      %588 = vmatprep.subr.mxu0 0.0
      %589 = vmatpush2.msra.mxu0 0.0
      %590 = vmatprep.subr.mxu0 0.0
      %591 = vmatpush2.msra.mxu0 0.0
      %592 = vmatprep.subr.mxu0 0.0
      %593 = vmatpush2.msra.mxu0 0.0
      %594 = vmatprep.subr.mxu0 0.0
      %595 = vmatpush2.msra.mxu0 0.0
      %596 = vmatprep.mubr.f32.mxu0 0.0
      %597 = vmatmul.mubr.f32.gmra.mxu0 %v527
      %v598 = vpop.f32.mrf.mxu0
      %v599 = vadd.f32 0.0, %v598
      %v600 = vpop.f32.mrf.mxu0
      %601 = vmatprep.mubr.f32.mxu0 0.0
      %602 = vmatmul.mubr.f32.gmra.mxu0 %v530
      %v603 = vpop.f32.mrf.mxu0
      %v604 = vadd.f32 0.0, %v603
      %v605 = vpop.f32.mrf.mxu0
      %606 = vdwg.mxu0
      %v607 = vadd.f32 %v519, %v599
      %v608 = vadd.f32 %v520, %v604
      %s609 = scalar_lea.vmem %s2, 96
      %v610 = vld [vmem:[%s609] sm:$0xff]
      %v611 = vld [vmem:[%s609 + $0x8] sm:$0xff]
      %v612 = vld [vmem:[%s609 + $0x10] sm:$0xff]
      %v613 = vld [vmem:[%s609 + $0x18] sm:$0xff]
      %v615 = vsel %vm349, %v330, 0
      %v618 = vsel %vm349, %v335, 0
      %620 = vmatprep.subr.mxu0 0.0
      %621 = vmatpush1.msra.mxu0 0.0
      %622 = vmatprep.subr.mxu0 0.0
      %623 = vmatpush1.msra.mxu0 0.0
      %624 = vmatprep.subr.mxu0 0.0
      %625 = vmatpush1.msra.mxu0 0.0
      %626 = vmatprep.subr.mxu0 0.0
      %627 = vmatpush1.msra.mxu0 0.0
      %628 = vmatprep.subr.mxu0 0.0
      %629 = vmatpush1.msra.mxu0 0.0
      %630 = vmatprep.subr.mxu0 0.0
      %631 = vmatpush1.msra.mxu0 0.0
      %632 = vmatprep.subr.mxu0 0.0
      %633 = vmatpush1.msra.mxu0 0.0
      %634 = vmatprep.subr.mxu0 0.0
      %635 = vmatpush1.msra.mxu0 0.0
      %636 = vmatprep.subr.mxu0 0.0
      %637 = vmatpush1.msra.mxu0 0.0
      %638 = vmatprep.subr.mxu0 0.0
      %639 = vmatpush1.msra.mxu0 0.0
      %640 = vmatprep.subr.mxu0 0.0
      %641 = vmatpush1.msra.mxu0 0.0
      %642 = vmatprep.subr.mxu0 0.0
      %643 = vmatpush1.msra.mxu0 0.0
      %644 = vmatprep.subr.mxu0 0.0
      %645 = vmatpush1.msra.mxu0 %v613
      %646 = vmatprep.subr.mxu0 0.0
      %647 = vmatpush1.msra.mxu0 %v612
      %648 = vmatprep.subr.mxu0 0.0
      %649 = vmatpush1.msra.mxu0 %v611
      %650 = vmatprep.subr.mxu0 0.0
      %651 = vmatpush1.msra.mxu0 %v610
      %652 = vmatprep.subr.mxu0 0.0
      %653 = vmatpush2.msra.mxu0 0.0
      %654 = vmatprep.subr.mxu0 0.0
      %655 = vmatpush2.msra.mxu0 0.0
      %656 = vmatprep.subr.mxu0 0.0
      %657 = vmatpush2.msra.mxu0 0.0
      %658 = vmatprep.subr.mxu0 0.0
      %659 = vmatpush2.msra.mxu0 0.0
      %660 = vmatprep.subr.mxu0 0.0
      %661 = vmatpush2.msra.mxu0 0.0
      %662 = vmatprep.subr.mxu0 0.0
      %663 = vmatpush2.msra.mxu0 0.0
      %664 = vmatprep.subr.mxu0 0.0
      %665 = vmatpush2.msra.mxu0 0.0
      %666 = vmatprep.subr.mxu0 0.0
      %667 = vmatpush2.msra.mxu0 0.0
      %668 = vmatprep.subr.mxu0 0.0
      %669 = vmatpush2.msra.mxu0 0.0
      %670 = vmatprep.subr.mxu0 0.0
      %671 = vmatpush2.msra.mxu0 0.0
      %672 = vmatprep.subr.mxu0 0.0
      %673 = vmatpush2.msra.mxu0 0.0
      %674 = vmatprep.subr.mxu0 0.0
      %675 = vmatpush2.msra.mxu0 0.0
      %676 = vmatprep.subr.mxu0 0.0
      %677 = vmatpush2.msra.mxu0 0.0
      %678 = vmatprep.subr.mxu0 0.0
      %679 = vmatpush2.msra.mxu0 0.0
      %680 = vmatprep.subr.mxu0 0.0
      %681 = vmatpush2.msra.mxu0 0.0
      %682 = vmatprep.subr.mxu0 0.0
      %683 = vmatpush2.msra.mxu0 0.0
      %684 = vmatprep.mubr.f32.mxu0 0.0
      %685 = vmatmul.mubr.f32.gmra.mxu0 %v615
      %v686 = vpop.f32.mrf.mxu0
      %v687 = vadd.f32 0.0, %v686
      %v688 = vpop.f32.mrf.mxu0
      %689 = vmatprep.mubr.f32.mxu0 0.0
      %690 = vmatmul.mubr.f32.gmra.mxu0 %v618
      %v691 = vpop.f32.mrf.mxu0
      %v692 = vadd.f32 0.0, %v691
      %v693 = vpop.f32.mrf.mxu0
      %694 = vdwg.mxu0
      %v695 = vadd.f32 %v607, %v687
      %v696 = vadd.f32 %v608, %v692
      %v697 = vmax.f32 %v695, 0.0
      %v698 = vmax.f32 %v696, 0.0
      %vm699 = vcmask 523264
      %700 = vst.msk [vmem:[%s197] sm:$0xff] %vm699, %v697
      %701 = vst.msk [vmem:[%s197 + $0x8] sm:$0xff] %vm699, %v698
      %p702 = scmp.lt.s32.totalorder %s15, 1
      %s703 = scalar_select %p702, %s15, 1
      %s704 = smul.addr %s703, 2
      %s705 = smul.addr %s704, 8
      %s706 = scalar_lea.vmem %s4, %s705
      // Predicated region
      $region37: #{spatio_conv_layer.1} parent=35 // pred_check
        %p707 = pneg %p122
      $region38: #{spatio_conv_layer.1} parent=35 // pred_check_branch
        %709 = sbr.rel (%p707) target = $region40
      $region39: #{spatio_conv_layer.1} parent=35 // pred_region
        _
      $region40: #{spatio_conv_layer.1} parent=35 // pred_fallthru
        _
    $region36: #{spatio_conv_layer.1} parent=5 // pred_fallthru
      _
    %p710 = scmp.le.s32.totalorder 2, %s10
    // Predicated region
    $region41: #{spatio_conv_layer.1} parent=5 // pred_check
      %p711 = pneg %p710
    $region42: #{spatio_conv_layer.1} parent=5 // pred_check_branch
      %713 = sbr.rel (%p711) target = $region44
    $region43: #{spatio_conv_layer.1} parent=5 // pred_region
      %s714 = ssub.s32 %s10, 2
      // Predicated region
      $region45: #{spatio_conv_layer.1} parent=43 // pred_check
        %p715 = pneg %p128
      $region46: #{spatio_conv_layer.1} parent=43 // pred_check_branch
        %717 = sbr.rel (%p715) target = $region48
      $region47: #{spatio_conv_layer.1} parent=43 // pred_region
        %p718 = scmp.lt.s32.totalorder %s16, 1
        %s719 = scalar_select %p718, %s16, 1
        %s720 = smul.addr %s719, 2
        %s721 = smul.addr %s720, 8
        %s722 = scalar_lea.vmem %s4, %s721
      $region48: #{spatio_conv_layer.1} parent=43 // pred_fallthru
        _
    $region44: #{spatio_conv_layer.1} parent=5 // pred_fallthru
      _
  $region6: #{spatio_conv_layer.1} parent=0 // loop_footer
    %s14 = sadd.s32 1, %s10
  $region7: #{spatio_conv_layer.1} parent=0 // loop_footer_branch
    %9 = sbr.rel target = $region3
  $region8: #{spatio_conv_layer.1} parent=0 // loop_exit
    _

</llo_original>
